<compile_context>
chip_gen: v7x
topology: tpu7x:2x2x1
jax: 0.10.0
libtpu: 0.0.40
codegen_flags: <defaults>
</compile_context>

<pallas_src>
from functools import partial

import jax
import jax.numpy as jnp
from jax.experimental import pallas as pl
from jax.experimental.pallas import tpu as pltpu

LANES = 128
TARGET_TILE_ROWS = 4096   # 2 MiB f32 per input block (review: 4-8x larger tiles)
CHUNK_ROWS = 512          # inner chunk: 256 KiB f32 temporaries per array
NUM_CORES = 2             # leading "parallel" axis -> both v7x TensorCores


def _make_wmse_kernel(*, rows, tile_rows, chunk_rows, num_tiles, tiles_per_core,
                      needs_mask, has_waste, reduce_sublanes, acc_rows):
    """Build the kernel with all tiling parameters statically closed over."""
    n_chunks = tile_rows // chunk_rows

    def kernel(x_ref, y_ref, acc_sq_ref, acc_sqy_ref):
        c = pl.program_id(0)          # core (parallel) axis
        i = pl.program_id(1)          # per-core tile (arbitrary) axis
        g = c * tiles_per_core + i    # global tile index

        @pl.when(i == 0)
        def _():
            acc_sq_ref[...] = jnp.zeros_like(acc_sq_ref)
            acc_sqy_ref[...] = jnp.zeros_like(acc_sqy_ref)

        def chunk_partials(x, y, row_start, masked):
            # x, y: (chunk_rows, LANES) in native dtype; upcast on the VPU.
            xf = x.astype(jnp.float32)
            yf = y.astype(jnp.float32)
            diff = xf - yf
            d2 = diff * diff
            d2y = d2 * yf
            if masked:
                row_ids = row_start + jax.lax.broadcasted_iota(
                    jnp.int32, (chunk_rows, LANES), 0)
                valid = row_ids < rows
                d2 = jnp.where(valid, d2, 0.0)
                d2y = jnp.where(valid, d2y, 0.0)
            if reduce_sublanes:
                # Pure-VPU partial reduction onto an (8, 128) vreg-sized slab.
                d2 = d2.reshape(chunk_rows // 8, 8, LANES).sum(axis=0)
                d2y = d2y.reshape(chunk_rows // 8, 8, LANES).sum(axis=0)
            return d2, d2y

        def accumulate(masked):
            tile_row0 = g * tile_rows
            if n_chunks == 1:
                p_sq, p_sqy = chunk_partials(x_ref[...], y_ref[...],
                                             tile_row0, masked)
            else:
                def body(k, carry):
                    a_sq, a_sqy = carry
                    off = pl.multiple_of(k * chunk_rows, chunk_rows)
                    p_sq, p_sqy = chunk_partials(
                        x_ref[pl.ds(off, chunk_rows), :],
                        y_ref[pl.ds(off, chunk_rows), :],
                        tile_row0 + off, masked)
                    return a_sq + p_sq, a_sqy + p_sqy

                zero = jnp.zeros((acc_rows, LANES), jnp.float32)
                p_sq, p_sqy = jax.lax.fori_loop(0, n_chunks, body, (zero, zero),
                                                unroll=True)
            acc_sq_ref[...] += p_sq[None]
            acc_sqy_ref[...] += p_sqy[None]

        if needs_mask:
            # Mask only on the last (ragged) global tile; all earlier tiles run
            # the unmasked fast path (per perf review).
            @pl.when(g < num_tiles - 1)
            def _():
                accumulate(False)

            @pl.when(g == num_tiles - 1)
            def _():
                accumulate(True)
        else:
            if has_waste:
                @pl.when(g < num_tiles)
                def _():
                    accumulate(False)
            else:
                accumulate(False)

    return kernel


@partial(jax.jit, static_argnames=("tile_rows",))
def weighted_mse_loss(X, Y, weight, *, tile_rows=None):
    """JAX/Pallas equivalent of weighted_MSEloss.forward (weight is a scalar)."""
    batch = X.shape[0]

    def stream_dtype(a):
        # Stream f32/bf16 natively; anything else goes through f32.
        if a.dtype in (jnp.float32, jnp.bfloat16):
            return a
        return a.astype(jnp.float32)

    x_flat = stream_dtype(X).reshape(-1)
    y_flat = stream_dtype(Y).reshape(-1)
    total = x_flat.shape[0]
    w32 = jnp.asarray(weight, jnp.float32)

    # Pad (a copy) only in the rare case the element count is not a multiple of
    # the lane width. Padded elements have X == Y == 0, contributing exactly 0.
    rem = total % LANES
    if rem:
        pad = LANES - rem
        x_flat = jnp.pad(x_flat, (0, pad))
        y_flat = jnp.pad(y_flat, (0, pad))
        total += pad

    rows = total // LANES
    if rows == 0:
        # Degenerate tiny input: not even one lane row; pure-jnp fallback.
        xf = x_flat.astype(jnp.float32)
        yf = y_flat.astype(jnp.float32)
        diff = xf - yf
        d2 = diff * diff
        s = jnp.sum(d2) + w32 * jnp.sum(d2 * yf)
        return s / jnp.float32(batch) / jnp.float32(2.0)

    x2d = x_flat.reshape(rows, LANES)
    y2d = y_flat.reshape(rows, LANES)

    if tile_rows is not None:
        assert tile_rows % 16 == 0, "custom tile_rows must be a multiple of 16"
        tr = min(tile_rows, rows)
    else:
        tr = min(TARGET_TILE_ROWS, rows)

    num_tiles = pl.cdiv(rows, tr)
    needs_mask = (rows % tr) != 0

    num_cores = NUM_CORES if num_tiles >= NUM_CORES else 1
    tiles_per_core = pl.cdiv(num_tiles, num_cores)
    has_waste = num_cores * tiles_per_core > num_tiles

    chunk_rows = CHUNK_ROWS if (tr % CHUNK_ROWS == 0) else tr
    reduce_sublanes = (chunk_rows % 8 == 0)
    acc_rows = 8 if reduce_sublanes else chunk_rows

    kernel = _make_wmse_kernel(
        rows=rows, tile_rows=tr, chunk_rows=chunk_rows,
        num_tiles=num_tiles, tiles_per_core=tiles_per_core,
        needs_mask=needs_mask, has_waste=has_waste,
        reduce_sublanes=reduce_sublanes, acc_rows=acc_rows)

    if has_waste:
        def in_map(c, i):
            return (jnp.minimum(c * tiles_per_core + i, num_tiles - 1), 0)
    else:
        def in_map(c, i):
            return (c * tiles_per_core + i, 0)

    def acc_map(c, i):
        return (c, 0, 0)

    # 2 inputs x 2 pipeline buffers x block, plus headroom for chunk temps.
    block_bytes = tr * LANES * (x2d.dtype.itemsize + y2d.dtype.itemsize)
    vmem_limit = int(2 * block_bytes + (16 << 20))

    acc_sq, acc_sqy = pl.pallas_call(
        kernel,
        out_shape=(
            jax.ShapeDtypeStruct((num_cores, acc_rows, LANES), jnp.float32),
            jax.ShapeDtypeStruct((num_cores, acc_rows, LANES), jnp.float32),
        ),
        grid_spec=pltpu.PrefetchScalarGridSpec(
            num_scalar_prefetch=0,
            grid=(num_cores, tiles_per_core),
            in_specs=[
                pl.BlockSpec((tr, LANES), in_map),
                pl.BlockSpec((tr, LANES), in_map),
            ],
            out_specs=[
                pl.BlockSpec((1, acc_rows, LANES), acc_map),
                pl.BlockSpec((1, acc_rows, LANES), acc_map),
            ],
        ),
        compiler_params=pltpu.CompilerParams(
            dimension_semantics=("parallel", "arbitrary"),
            vmem_limit_bytes=vmem_limit,
        ),
    )(x2d, y2d)

    # Single cross-lane reduction of the vector accumulators, combine with the
    # weight, then normalize (matches the PyTorch module: / X.shape[0] / 2).
    s = jnp.sum(acc_sq) + w32 * jnp.sum(acc_sqy)
    return s / jnp.float32(batch) / jnp.float32(2.0)


def _reference(X, Y, weight):
    Xf = X.astype(jnp.float32)
    Yf = Y.astype(jnp.float32)
    diff = Xf - Yf
    diff_sq = diff * diff
    pos = diff_sq * Yf
    return jnp.sum(diff_sq + weight * pos) / X.shape[0] / 2.0


if __name__ == "__main__":
    weight = 3.0

    # Case 1: small NCHW, element count divisible by 128 (single-tile path).
    kx, ky = jax.random.split(jax.random.PRNGKey(0))
    X = jax.random.normal(kx, (2, 4, 16, 16), dtype=jnp.float32)
    Y = (jax.random.uniform(ky, (2, 4, 16, 16)) > 0.5).astype(jnp.float32)
    loss = weighted_mse_loss(X, Y, weight)
    jax.block_until_ready(loss)
    ref = _reference(X, Y, weight)
    assert jnp.allclose(loss, ref, rtol=1e-5, atol=1e-5), (loss, ref)

    # Case 2: row count not a multiple of 8 (full-extent block path).
    kx2, ky2 = jax.random.split(jax.random.PRNGKey(1))
    X2 = jax.random.normal(kx2, (2, 3, 16, 16), dtype=jnp.float32)
    Y2 = (jax.random.uniform(ky2, (2, 3, 16, 16)) > 0.5).astype(jnp.float32)
    loss2 = weighted_mse_loss(X2, Y2, weight)
    jax.block_until_ready(loss2)
    ref2 = _reference(X2, Y2, weight)
    assert jnp.allclose(loss2, ref2, rtol=1e-5, atol=1e-5), (loss2, ref2)

    # Case 3: multi-tile path with a smaller forced tile — exercises the
    # two-core grid, the inner fori_loop over chunks, and the gated last-tile
    # row mask (rows=1600, tile=1024 -> 2 tiles, ragged second tile).
    kx3, ky3 = jax.random.split(jax.random.PRNGKey(2))
    X3 = jax.random.normal(kx3, (2, 4, 160, 160), dtype=jnp.float32)
    Y3 = (jax.random.uniform(ky3, (2, 4, 160, 160)) > 0.5).astype(jnp.float32)
    loss3 = weighted_mse_loss(X3, Y3, weight, tile_rows=1024)
    jax.block_until_ready(loss3)
    ref3 = _reference(X3, Y3, weight)
    assert jnp.allclose(loss3, ref3, rtol=1e-4, atol=1e-4), (loss3, ref3)

    # Case 4: native bf16 streaming (no wrapper upcast), f32 accumulation.
    kx4, ky4 = jax.random.split(jax.random.PRNGKey(3))
    X4 = jax.random.normal(kx4, (2, 4, 32, 32), dtype=jnp.float32).astype(jnp.bfloat16)
    Y4 = (jax.random.uniform(ky4, (2, 4, 32, 32)) > 0.5).astype(jnp.bfloat16)
    loss4 = weighted_mse_loss(X4, Y4, weight)
    jax.block_until_ready(loss4)
    ref4 = _reference(X4, Y4, weight)
    assert jnp.allclose(loss4, ref4, rtol=2e-2, atol=2e-2), (loss4, ref4)

    print("KERNEL_OK")
</pallas_src>

<mosaic_0001>
module attributes {stable_mosaic.version = 11 : i64} {
  func.func @kernel(%arg0: i32, %arg1: i32, %arg2: memref<16x128xf32, #tpu.memory_space<vmem>>, %arg3: memref<16x128xf32, #tpu.memory_space<vmem>>, %arg4: memref<1x8x128xf32, #tpu.memory_space<vmem>>, %arg5: memref<1x8x128xf32, #tpu.memory_space<vmem>>) attributes {dimension_semantics = [#tpu.dimension_semantics<parallel>, #tpu.dimension_semantics<arbitrary>], iteration_bounds = array<i64: 1, 1>, scalar_prefetch = 0 : i64, scratch_operands = 0 : i64, tpu.core_type = #tpu.core_type<tc>, window_params = [{transform_indices = @transform_0, window_bounds = array<i64: 16, 128>}, {transform_indices = @transform_1, window_bounds = array<i64: 16, 128>}, {transform_indices = @transform_2, window_bounds = array<i64: 1, 8, 128>}, {transform_indices = @transform_3, window_bounds = array<i64: 1, 8, 128>}]} {
    %c0_i32 = arith.constant 0 : i32
    %0 = arith.cmpi eq, %arg1, %c0_i32 : i32
    %1 = arith.extui %0 : i1 to i32
    %c0_i32_0 = arith.constant 0 : i32
    %2 = arith.cmpi ne, %1, %c0_i32_0 : i32
    scf.if %2 {
      %cst_17 = arith.constant 0.000000e+00 : f32
      %20 = vector.broadcast %cst_17 : f32 to vector<1x8x128xf32>
      %c0_18 = arith.constant 0 : index
      %c0_19 = arith.constant 0 : index
      %c0_20 = arith.constant 0 : index
      %21 = vector.load %arg4[%c0_18, %c0_19, %c0_20] : memref<1x8x128xf32, #tpu.memory_space<vmem>>, vector<1x8x128xf32>
      tpu.vector_store %arg4[%c0_18, %c0_19, %c0_20], %20 {strides = array<i32>} : memref<1x8x128xf32, #tpu.memory_space<vmem>>, vector<1x8x128xf32>,
      %cst_21 = arith.constant 0.000000e+00 : f32
      %22 = vector.broadcast %cst_21 : f32 to vector<1x8x128xf32>
      %c0_22 = arith.constant 0 : index
      %c0_23 = arith.constant 0 : index
      %c0_24 = arith.constant 0 : index
      %23 = vector.load %arg5[%c0_22, %c0_23, %c0_24] : memref<1x8x128xf32, #tpu.memory_space<vmem>>, vector<1x8x128xf32>
      tpu.vector_store %arg5[%c0_22, %c0_23, %c0_24], %22 {strides = array<i32>} : memref<1x8x128xf32, #tpu.memory_space<vmem>>, vector<1x8x128xf32>,
    } else {
    }
    %c0 = arith.constant 0 : index
    %c0_1 = arith.constant 0 : index
    %3 = vector.load %arg2[%c0, %c0_1] : memref<16x128xf32, #tpu.memory_space<vmem>>, vector<16x128xf32>
    %c0_2 = arith.constant 0 : index
    %c0_3 = arith.constant 0 : index
    %4 = vector.load %arg3[%c0_2, %c0_3] : memref<16x128xf32, #tpu.memory_space<vmem>>, vector<16x128xf32>
    %5 = arith.subf %3, %4 : vector<16x128xf32>
    %6 = arith.mulf %5, %5 : vector<16x128xf32>
    %7 = arith.mulf %6, %4 : vector<16x128xf32>
    %8 = vector.shape_cast %6 : vector<16x128xf32> to vector<2x8x128xf32>
    %cst = arith.constant dense<0.000000e+00> : vector<8x128xf32>
    %9 = vector.multi_reduction <add>, %8, %cst [0] : vector<2x8x128xf32> to vector<8x128xf32>
    %10 = vector.shape_cast %7 : vector<16x128xf32> to vector<2x8x128xf32>
    %cst_4 = arith.constant dense<0.000000e+00> : vector<8x128xf32>
    %11 = vector.multi_reduction <add>, %10, %cst_4 [0] : vector<2x8x128xf32> to vector<8x128xf32>
    %c0_5 = arith.constant 0 : index
    %c0_6 = arith.constant 0 : index
    %c0_7 = arith.constant 0 : index
    %12 = vector.load %arg4[%c0_5, %c0_6, %c0_7] : memref<1x8x128xf32, #tpu.memory_space<vmem>>, vector<1x8x128xf32>
    %13 = vector.shape_cast %9 : vector<8x128xf32> to vector<1x8x128xf32>
    %14 = arith.addf %12, %13 : vector<1x8x128xf32>
    %c0_8 = arith.constant 0 : index
    %c0_9 = arith.constant 0 : index
    %c0_10 = arith.constant 0 : index
    %15 = vector.load %arg4[%c0_8, %c0_9, %c0_10] : memref<1x8x128xf32, #tpu.memory_space<vmem>>, vector<1x8x128xf32>
    tpu.vector_store %arg4[%c0_8, %c0_9, %c0_10], %14 {strides = array<i32>} : memref<1x8x128xf32, #tpu.memory_space<vmem>>, vector<1x8x128xf32>,
    %c0_11 = arith.constant 0 : index
    %c0_12 = arith.constant 0 : index
    %c0_13 = arith.constant 0 : index
    %16 = vector.load %arg5[%c0_11, %c0_12, %c0_13] : memref<1x8x128xf32, #tpu.memory_space<vmem>>, vector<1x8x128xf32>
    %17 = vector.shape_cast %11 : vector<8x128xf32> to vector<1x8x128xf32>
    %18 = arith.addf %16, %17 : vector<1x8x128xf32>
    %c0_14 = arith.constant 0 : index
    %c0_15 = arith.constant 0 : index
    %c0_16 = arith.constant 0 : index
    %19 = vector.load %arg5[%c0_14, %c0_15, %c0_16] : memref<1x8x128xf32, #tpu.memory_space<vmem>>, vector<1x8x128xf32>
    tpu.vector_store %arg5[%c0_14, %c0_15, %c0_16], %18 {strides = array<i32>} : memref<1x8x128xf32, #tpu.memory_space<vmem>>, vector<1x8x128xf32>,
    return
  }
  func.func @transform_0(%arg0: i32, %arg1: i32) -> (i32, i32) {
    %c1_i32 = arith.constant 1 : i32
    %0 = arith.muli %arg0, %c1_i32 : i32
    %1 = arith.addi %0, %arg1 : i32
    %c0_i32 = arith.constant 0 : i32
    %c0_i32_0 = arith.constant 0 : i32
    return %1, %c0_i32 : i32, i32
  }
  func.func @transform_1(%arg0: i32, %arg1: i32) -> (i32, i32) {
    %c1_i32 = arith.constant 1 : i32
    %0 = arith.muli %arg0, %c1_i32 : i32
    %1 = arith.addi %0, %arg1 : i32
    %c0_i32 = arith.constant 0 : i32
    %c0_i32_0 = arith.constant 0 : i32
    return %1, %c0_i32 : i32, i32
  }
  func.func @transform_2(%arg0: i32, %arg1: i32) -> (i32, i32, i32) {
    %c0_i32 = arith.constant 0 : i32
    %c0_i32_0 = arith.constant 0 : i32
    %c0_i32_1 = arith.constant 0 : i32
    return %arg0, %c0_i32, %c0_i32_0 : i32, i32, i32
  }
  func.func @transform_3(%arg0: i32, %arg1: i32) -> (i32, i32, i32) {
    %c0_i32 = arith.constant 0 : i32
    %c0_i32_0 = arith.constant 0 : i32
    %c0_i32_1 = arith.constant 0 : i32
    return %arg0, %c0_i32, %c0_i32_0 : i32, i32, i32
  }
}

</mosaic_0001>

<llo_original>
// kernel: weighted_mse_loss.1
$region0: #{weighted_mse_loss.1}
  #allocation0 [shape = 'u32[]', space=smem, size = 0x4, offset = 0x4, fixed_abs, tag = 'smem constant byte address 0x4 - core index']
  #allocation1 [shape = 'u32[144,128]{1,0:T(1,128)}', space=vmem, size = 0x12000, scoped, tag = 'internal scratch']
  %s0 = inlined_call_operand.vmem [shape: f32[16,128], index: 0, kind: input, shape index: {}]
  %s1 = inlined_call_operand.vmem [shape: f32[16,128], index: 1, kind: input, shape index: {}]
  %s2 = inlined_call_operand.vmem [shape: f32[1,8,128], index: 2, kind: output, shape index: {0}]
  %s3 = inlined_call_operand.vmem [shape: f32[1,8,128], index: 3, kind: output, shape index: {1}]
  %4 = xla_tuple %s2, %s3
  %s5 = sld [smem:[#allocation0]]
  $region30: #{weighted_mse_loss.1} parent=0
    _
  %s7 = ssub.s32 1, %s5
  %s8 = scalar_select 0, %s7, %s5
  // Predicated region
  $region2: #{weighted_mse_loss.1} parent=0 // pred_check
    _
  $region3: #{weighted_mse_loss.1} parent=0 // pred_check_branch
    %10 = sbr.rel (0) target = $region5
  $region4: #{weighted_mse_loss.1} parent=0 // pred_region
    %s11 = sadd.s32 0, 0
    %s12 = smul.u32 2, %s11
    %p13 = scmp.lt.s32.totalorder %s12, 1
    %s14 = scalar_select %p13, %s12, 1
    %s15 = smul.addr %s14, 8
    %s16 = scalar_lea.vmem %s0, %s15
    %s17 = sadd.s32 0, 0
    %s18 = smul.u32 2, %s17
  $region5: #{weighted_mse_loss.1} parent=0 // pred_fallthru
    _
  // Predicated region
  $region6: #{weighted_mse_loss.1} parent=0 // pred_check
    _
  $region7: #{weighted_mse_loss.1} parent=0 // pred_check_branch
    %20 = sbr.rel (0) target = $region9
  $region8: #{weighted_mse_loss.1} parent=0 // pred_region
    %s21 = sadd.s32 0, 0
    %s22 = smul.u32 2, %s21
    %p23 = scmp.lt.s32.totalorder %s22, 1
    %s24 = scalar_select %p23, %s22, 1
    %s25 = smul.addr %s24, 8
    %s26 = scalar_lea.vmem %s1, %s25
    %s27 = sadd.s32 0, 0
    %s28 = smul.u32 2, %s27
  $region9: #{weighted_mse_loss.1} parent=0 // pred_fallthru
    _
  %s29 = sadd.s32 0, 0
  %s30 = smul.u32 2, %s29
  %p31 = scmp.lt.s32.totalorder %s30, 1
  %s32 = scalar_select %p31, %s30, 1
  %s33 = smul.addr %s32, 8
  %s34 = scalar_lea.vmem %s0, %s33
  %s35 = sadd.s32 0, 0
  %s36 = smul.u32 2, %s35
  %p37 = scmp.lt.s32.totalorder %s36, 1
  %s38 = scalar_select %p37, %s36, 1
  %s39 = smul.addr %s38, 8
  %s40 = scalar_lea.vmem %s1, %s39
  %s41 = sadd.s32 0, 0
  %s42 = smul.u32 2, %s41
  %p43 = scmp.lt.s32.totalorder %s42, 1
  %s44 = scalar_select %p43, %s42, 1
  %s45 = smul.addr %s44, 8
  %s46 = scalar_lea.vmem %s0, %s45
  %s47 = sadd.s32 0, 0
  %s48 = smul.u32 2, %s47
  %s49 = sadd.s32 0, 0
  %s50 = smul.u32 2, %s49
  %p51 = scmp.lt.s32.totalorder %s50, 1
  %s52 = scalar_select %p51, %s50, 1
  %s53 = smul.addr %s52, 8
  %s54 = scalar_lea.vmem %s1, %s53
  %s55 = sadd.s32 0, 0
  %s56 = smul.u32 2, %s55
  %p57 = scmp.eq.s32.totalorder 0, 0
  // Predicated region
  $region10: #{weighted_mse_loss.1} parent=0 // pred_check
    %p58 = pneg %p57
  $region11: #{weighted_mse_loss.1} parent=0 // pred_check_branch
    %60 = sbr.rel (%p58) target = $region13
  $region12: #{weighted_mse_loss.1} parent=0 // pred_region
    %61 = vst [vmem:[%s2] sm:$0xff] 0.0
    %62 = vst [vmem:[%s3] sm:$0xff] 0.0
  $region13: #{weighted_mse_loss.1} parent=0 // pred_fallthru
    _
  %v63 = vld [vmem:[%s46] sm:$0xff]
  %v64 = vld [vmem:[%s46 + $0x8] sm:$0xff]
  %v65 = vld [vmem:[%s54] sm:$0xff]
  %v66 = vld [vmem:[%s54 + $0x8] sm:$0xff]
  %v67 = vsub.f32 %v63, %v65
  %v68 = vsub.f32 %v64, %v66
  %v69 = vmul.f32 %v67, %v67
  %v70 = vmul.f32 %v68, %v68
  %v71 = vmul.f32 %v69, %v65
  %v72 = vmul.f32 %v70, %v66
  %v73 = vadd.f32 %v69, %v70
  %v74 = vadd.f32 %v71, %v72
  %v75 = vld [vmem:[%s2] sm:$0xff]
  %v76 = vadd.f32 %v75, %v73
  %77 = vst [vmem:[%s2] sm:$0xff] %v76
  %v78 = vld [vmem:[%s3] sm:$0xff]
  %v79 = vadd.f32 %v78, %v74
  %80 = vst [vmem:[%s3] sm:$0xff] %v79
  // Predicated region
  $region14: #{weighted_mse_loss.1} parent=0 // pred_check
    _
  $region15: #{weighted_mse_loss.1} parent=0 // pred_check_branch
    %82 = sbr.rel (0) target = $region17
  $region16: #{weighted_mse_loss.1} parent=0 // pred_region
    _
  $region17: #{weighted_mse_loss.1} parent=0 // pred_fallthru
    _
  // Predicated region
  $region18: #{weighted_mse_loss.1} parent=0 // pred_check
    _
  $region19: #{weighted_mse_loss.1} parent=0 // pred_check_branch
    %84 = sbr.rel (0) target = $region21
  $region20: #{weighted_mse_loss.1} parent=0 // pred_region
    _
  $region21: #{weighted_mse_loss.1} parent=0 // pred_fallthru
    _
  // Predicated region
  $region22: #{weighted_mse_loss.1} parent=0 // pred_check
    _
  $region23: #{weighted_mse_loss.1} parent=0 // pred_check_branch
    %86 = sbr.rel (0) target = $region25
  $region24: #{weighted_mse_loss.1} parent=0 // pred_region
    _
  $region25: #{weighted_mse_loss.1} parent=0 // pred_fallthru
    _
  // Predicated region
  $region26: #{weighted_mse_loss.1} parent=0 // pred_check
    _
  $region27: #{weighted_mse_loss.1} parent=0 // pred_check_branch
    %88 = sbr.rel (0) target = $region29
  $region28: #{weighted_mse_loss.1} parent=0 // pred_region
    _
  $region29: #{weighted_mse_loss.1} parent=0 // pred_fallthru
    _

</llo_original>
